<compile_context>
chip_gen: v5e
topology: v5e:2x2
jax: 0.10.0
libtpu: 0.0.40
codegen_flags: <defaults>
</compile_context>

<pallas_src>
import functools

import jax
import jax.numpy as jnp
import numpy as np
from jax.experimental import pallas as pl
from jax.experimental.pallas import tpu as pltpu


def _round_up(v, m):
    return ((v + m - 1) // m) * m


def _pool_linear_sigmoid_kernel(glo_ref, ghi_ref, batch_ref, x_ref, wt_ref,
                                b_ref, out_ref, acc_ref, *, total_nodes):
    """One node chunk of segment-sum pooling; Linear+sigmoid on the last step.

    glo_ref/ghi_ref: [num_chunks] int32 (SMEM)  min/max graph id per chunk
    batch_ref:       [1, TN]  int32             graph id per node (row layout)
    x_ref:           [TN, F]  f32                node features for this chunk
    wt_ref:          [F, Cpad] f32               pre-transposed Linear weight
    b_ref:           [1, Cpad] f32               lane-padded bias
    out_ref:         [Bpad, Cpad] f32            final sigmoid(logits)
    acc_ref:         [Bpad, F] f32 scratch       resident pooled accumulator
    """
    n = pl.program_id(0)
    n_chunks = pl.num_programs(0)
    tn = x_ref.shape[0]
    bp = acc_ref.shape[0]

    @pl.when(n == 0)
    def _init():
        acc_ref[...] = jnp.zeros_like(acc_ref)

    g_lo = glo_ref[n]
    g_hi = ghi_ref[n]

    # Row-validity mask for the ragged final chunk.  Must be a select, not a
    # *0 multiply: out-of-range rows hold unspecified VMEM (possibly NaN/Inf).
    row_ids = jax.lax.broadcasted_iota(jnp.int32, (tn, 1), 0)
    valid = (n * tn + row_ids) < total_nodes                       # [TN, 1]

    @pl.when(g_lo == g_hi)
    def _single_graph_chunk():
        # Whole chunk belongs to one graph (common case for a sorted PyG
        # batch vector): one masked sublane sum, hidden under the x DMA.
        contrib = jnp.sum(jnp.where(valid, x_ref[...], 0.0),
                          axis=0, keepdims=True)                   # [1, F]
        row_sel = jax.lax.broadcasted_iota(jnp.int32, (bp, 1), 0) == g_lo
        acc_ref[...] = acc_ref[...] + jnp.where(row_sel, contrib, 0.0)

    @pl.when(g_lo != g_hi)
    def _boundary_chunk():
        # Chunk straddles >= 2 graphs (at most num_graphs-1 such chunks when
        # batch is sorted): fall back to a one-hot segment-sum on the MXU.
        x_clean = jnp.where(valid, x_ref[...], 0.0)                # [TN, F]
        seg_ids = jax.lax.broadcasted_iota(jnp.int32, (bp, tn), 0)
        onehot = (seg_ids == batch_ref[...]).astype(jnp.float32)   # [Bpad, TN]
        acc_ref[...] = acc_ref[...] + jnp.dot(
            onehot, x_clean, preferred_element_type=jnp.float32)

    @pl.when(n == n_chunks - 1)
    def _finalize():
        logits = jnp.dot(acc_ref[...], wt_ref[...],
                         preferred_element_type=jnp.float32) + b_ref[...]
        out_ref[...] = jax.nn.sigmoid(logits)


def logistic_regressor_forward(x, batch, weight, bias, num_graphs, tile_n=None):
    """x: [N, F] f32, batch: [N] int32, weight: [C, F], bias: [C].

    Returns sigmoid(Linear(global_add_pool(x, batch))) with dim 1 squeezed
    when out_channels == 1 (matching torch .squeeze(dim=1)).
    """
    N, F = x.shape
    C = weight.shape[0]
    B = int(num_graphs)

    B_pad = _round_up(max(B, 1), 8)
    C_pad = _round_up(max(C, 1), 128)
    F_lanes = _round_up(max(F, 1), 128)   # lane-padded width of one x row in VMEM

    # Tile size along N, budgeted against the *lane-padded* VMEM footprint:
    # 2 pipeline buffers + 1 in-kernel masked copy of the x block, plus the
    # (sublane-padded) batch-id row, kept under ~12 MiB so the streamed
    # buffers are safe on v5e / v6e / v7x.
    bytes_per_node = 3 * F_lanes * 4 + 2 * 8 * 4
    if tile_n is None:
        budget = 12 * 1024 * 1024
        tile_n = max(128, (budget // bytes_per_node) // 128 * 128)
    tile_n = _round_up(int(tile_n), 128)
    tile_n = min(tile_n, _round_up(max(N, 1), 128))
    num_chunks = pl.cdiv(N, tile_n)

    # Per-chunk min/max graph id (scalar-prefetched).  Correct for any batch
    # vector; fast (single-sum path) when it is sorted, as in PyG.  This is a
    # single pass over the 4N-byte id vector -- the big x array is NOT copied.
    ids = batch.astype(jnp.int32)
    pad_len = num_chunks * tile_n
    lo_src = jnp.full((pad_len,), B_pad - 1, jnp.int32).at[:N].set(ids)
    hi_src = jnp.zeros((pad_len,), jnp.int32).at[:N].set(ids)
    g_lo = lo_src.reshape(num_chunks, tile_n).min(axis=1)
    g_hi = hi_src.reshape(num_chunks, tile_n).max(axis=1)

    # Small parameter arrays (padded; lane-dense output columns).
    batch_row = ids.reshape(1, N)
    wt_p = jnp.zeros((F, C_pad), jnp.float32).at[:, :C].set(
        weight.astype(jnp.float32).T)
    bias_p = jnp.zeros((1, C_pad), jnp.float32).at[0, :C].set(
        bias.astype(jnp.float32))
    x_f32 = x.astype(jnp.float32)

    # Explicit scoped-VMEM limit sized from the real (lane-padded) footprint,
    # with headroom; stays well below every generation's physical VMEM.
    stream_bytes = bytes_per_node * tile_n
    vmem_limit = int(min(max(2 * stream_bytes, 20 << 20), 48 << 20))

    kernel = functools.partial(_pool_linear_sigmoid_kernel, total_nodes=N)

    grid_spec = pltpu.PrefetchScalarGridSpec(
        num_scalar_prefetch=2,
        grid=(num_chunks,),
        in_specs=[
            pl.BlockSpec((1, tile_n), lambda n, lo, hi: (0, n)),   # batch ids
            pl.BlockSpec((tile_n, F), lambda n, lo, hi: (n, 0)),   # x (streamed)
            pl.BlockSpec((F, C_pad), lambda n, lo, hi: (0, 0)),    # W.T (resident)
            pl.BlockSpec((1, C_pad), lambda n, lo, hi: (0, 0)),    # bias (resident)
        ],
        out_specs=pl.BlockSpec((B_pad, C_pad), lambda n, lo, hi: (0, 0)),
        scratch_shapes=[pltpu.VMEM((B_pad, F), jnp.float32)],
    )

    out_padded = pl.pallas_call(
        kernel,
        out_shape=jax.ShapeDtypeStruct((B_pad, C_pad), jnp.float32),
        grid_spec=grid_spec,
        compiler_params=pltpu.CompilerParams(
            dimension_semantics=("arbitrary",),
            vmem_limit_bytes=vmem_limit),
    )(g_lo, g_hi, batch_row, x_f32, wt_p, bias_p)

    out = out_padded[:B, :C]
    # torch.sigmoid(x).squeeze(dim=1): drops dim 1 only when out_channels == 1.
    if C == 1:
        out = out[:, 0]
    return out


if __name__ == "__main__":
    # Small synthetic "graph batch": 4 graphs, 300 nodes total, 32 features.
    N = 300          # total nodes (not a multiple of the tile -> ragged tail)
    F = 32           # in_channels
    C = 1            # out_channels (logistic regression)
    B = 4            # number of graphs

    key = jax.random.PRNGKey(0)
    kx, kw = jax.random.split(key)

    x = jax.random.normal(kx, (N, F), dtype=jnp.float32)
    # Sorted graph ids (standard PyG batching): 4 graphs of 75 nodes each.
    batch = jnp.repeat(jnp.arange(B, dtype=jnp.int32), N // B)

    # Deterministic parameter init matching the PyTorch module:
    # xavier_normal_ for weight, constant 0.1 for bias.
    xavier_std = float(np.sqrt(2.0 / (F + C)))
    weight = xavier_std * jax.random.normal(kw, (C, F), dtype=jnp.float32)
    bias = jnp.full((C,), 0.1, dtype=jnp.float32)

    # Pure-JAX reference.
    pooled_ref = jax.ops.segment_sum(x, batch, num_segments=B)
    ref = jax.nn.sigmoid(pooled_ref @ weight.T + bias)[:, 0]

    # tile_n=128 -> 3 chunks: exercises init, the multi-graph (one-hot) path,
    # the single-graph fast path with a ragged masked tail, and finalize.
    out_small = logistic_regressor_forward(x, batch, weight, bias,
                                           num_graphs=B, tile_n=128)
    out_small = jax.block_until_ready(out_small)
    np.testing.assert_allclose(np.asarray(out_small), np.asarray(ref),
                               rtol=1e-5, atol=1e-5)

    # Auto tile size -> one chunk spanning all graphs (boundary path +
    # init/finalize in the same step).
    out_auto = logistic_regressor_forward(x, batch, weight, bias, num_graphs=B)
    out_auto = jax.block_until_ready(out_auto)
    np.testing.assert_allclose(np.asarray(out_auto), np.asarray(ref),
                               rtol=1e-5, atol=1e-5)

    assert out_small.shape == (B,)
    print("KERNEL_OK")
</pallas_src>

<mosaic_0001>
module attributes {stable_mosaic.version = 11 : i64} {
  func.func @_pool_linear_sigmoid_kernel(%arg0: i32, %arg1: memref<3xi32, #tpu.memory_space<smem>>, %arg2: memref<3xi32, #tpu.memory_space<smem>>, %arg3: memref<1x128xi32, #tpu.memory_space<vmem>>, %arg4: memref<128x32xf32, #tpu.memory_space<vmem>>, %arg5: memref<32x128xf32, #tpu.memory_space<vmem>>, %arg6: memref<1x128xf32, #tpu.memory_space<vmem>>, %arg7: memref<8x128xf32, #tpu.memory_space<vmem>>, %arg8: memref<8x32xf32, #tpu.memory_space<vmem>>) attributes {dimension_semantics = [#tpu.dimension_semantics<arbitrary>], iteration_bounds = array<i64: 3>, scalar_prefetch = 2 : i64, scratch_operands = 1 : i64, tpu.core_type = #tpu.core_type<tc>, window_params = [{transform_indices = @transform_0, window_bounds = array<i64: 1, 128>}, {transform_indices = @transform_1, window_bounds = array<i64: 128, 32>}, {pipeline_mode = #tpu.pipeline_mode<synchronous>, transform_indices = @transform_2, window_bounds = array<i64: 32, 128>}, {pipeline_mode = #tpu.pipeline_mode<synchronous>, transform_indices = @transform_3, window_bounds = array<i64: 1, 128>}, {pipeline_mode = #tpu.pipeline_mode<synchronous>, transform_indices = @transform_4, window_bounds = array<i64: 8, 128>}]} {
    %c0_i32 = arith.constant 0 : i32
    %0 = arith.cmpi eq, %arg0, %c0_i32 : i32
    %1 = arith.extui %0 : i1 to i32
    %c0_i32_0 = arith.constant 0 : i32
    %2 = arith.cmpi ne, %1, %c0_i32_0 : i32
    scf.if %2 {
      %cst = arith.constant 0.000000e+00 : f32
      %22 = vector.broadcast %cst : f32 to vector<8x32xf32>
      %c0 = arith.constant 0 : index
      %c0_4 = arith.constant 0 : index
      %23 = vector.load %arg8[%c0, %c0_4] : memref<8x32xf32, #tpu.memory_space<vmem>>, vector<8x32xf32>
      tpu.vector_store %arg8[%c0, %c0_4], %22 {strides = array<i32>} : memref<8x32xf32, #tpu.memory_space<vmem>>, vector<8x32xf32>,
    } else {
    }
    %3 = arith.index_cast %arg0 : i32 to index
    %4 = memref.load %arg1[%3] : memref<3xi32, #tpu.memory_space<smem>>
    %5 = arith.index_cast %arg0 : i32 to index
    %6 = memref.load %arg2[%5] : memref<3xi32, #tpu.memory_space<smem>>
    %7 = tpu.iota {dimensions = array<i32: 0>} : vector<128x1xi32>
    %c128_i32 = arith.constant 128 : i32
    %8 = arith.muli %arg0, %c128_i32 : i32
    %9 = vector.broadcast %8 : i32 to vector<128x1xi32>
    %10 = arith.addi %9, %7 : vector<128x1xi32>
    %c300_i32 = arith.constant 300 : i32
    %11 = vector.broadcast %c300_i32 : i32 to vector<128x1xi32>
    %12 = arith.cmpi slt, %10, %11 : vector<128x1xi32>
    %13 = arith.cmpi eq, %4, %6 : i32
    %14 = arith.extui %13 : i1 to i32
    %c0_i32_1 = arith.constant 0 : i32
    %15 = arith.cmpi ne, %14, %c0_i32_1 : i32
    scf.if %15 {
      %c0 = arith.constant 0 : index
      %c0_4 = arith.constant 0 : index
      %22 = vector.load %arg4[%c0, %c0_4] : memref<128x32xf32, #tpu.memory_space<vmem>>, vector<128x32xf32>
      %cst = arith.constant 0.000000e+00 : f32
      %23 = vector.shape_cast %12 : vector<128x1xi1> to vector<128x1xi1>
      %24 = vector.broadcast %23 : vector<128x1xi1> to vector<128x32xi1>
      %25 = vector.broadcast %cst : f32 to vector<128x32xf32>
      %26 = arith.select %24, %22, %25 : vector<128x32xi1>, vector<128x32xf32>
      %cst_5 = arith.constant dense<0.000000e+00> : vector<32xf32>
      %27 = vector.multi_reduction <add>, %26, %cst_5 [0] : vector<128x32xf32> to vector<32xf32>
      %28 = vector.shape_cast %27 : vector<32xf32> to vector<1x32xf32>
      %29 = tpu.iota {dimensions = array<i32: 0>} : vector<8x1xi32>
      %30 = vector.broadcast %4 : i32 to vector<8x1xi32>
      %31 = arith.cmpi eq, %29, %30 : vector<8x1xi32>
      %c0_6 = arith.constant 0 : index
      %c0_7 = arith.constant 0 : index
      %32 = vector.load %arg8[%c0_6, %c0_7] : memref<8x32xf32, #tpu.memory_space<vmem>>, vector<8x32xf32>
      %cst_8 = arith.constant 0.000000e+00 : f32
      %33 = vector.shape_cast %31 : vector<8x1xi1> to vector<8x1xi1>
      %34 = vector.broadcast %33 : vector<8x1xi1> to vector<8x32xi1>
      %35 = vector.shape_cast %28 : vector<1x32xf32> to vector<1x32xf32>
      %36 = vector.broadcast %35 : vector<1x32xf32> to vector<8x32xf32>
      %37 = vector.broadcast %cst_8 : f32 to vector<8x32xf32>
      %38 = arith.select %34, %36, %37 : vector<8x32xi1>, vector<8x32xf32>
      %39 = arith.addf %32, %38 : vector<8x32xf32>
      %c0_9 = arith.constant 0 : index
      %c0_10 = arith.constant 0 : index
      %40 = vector.load %arg8[%c0_9, %c0_10] : memref<8x32xf32, #tpu.memory_space<vmem>>, vector<8x32xf32>
      tpu.vector_store %arg8[%c0_9, %c0_10], %39 {strides = array<i32>} : memref<8x32xf32, #tpu.memory_space<vmem>>, vector<8x32xf32>,
    } else {
    }
    %16 = arith.cmpi ne, %4, %6 : i32
    %17 = arith.extui %16 : i1 to i32
    %c0_i32_2 = arith.constant 0 : i32
    %18 = arith.cmpi ne, %17, %c0_i32_2 : i32
    scf.if %18 {
      %c0 = arith.constant 0 : index
      %c0_4 = arith.constant 0 : index
      %22 = vector.load %arg4[%c0, %c0_4] : memref<128x32xf32, #tpu.memory_space<vmem>>, vector<128x32xf32>
      %cst = arith.constant 0.000000e+00 : f32
      %23 = vector.shape_cast %12 : vector<128x1xi1> to vector<128x1xi1>
      %24 = vector.broadcast %23 : vector<128x1xi1> to vector<128x32xi1>
      %25 = vector.broadcast %cst : f32 to vector<128x32xf32>
      %26 = arith.select %24, %22, %25 : vector<128x32xi1>, vector<128x32xf32>
      %27 = tpu.iota {dimensions = array<i32: 0>} : vector<8x128xi32>
      %c0_5 = arith.constant 0 : index
      %c0_6 = arith.constant 0 : index
      %28 = vector.load %arg3[%c0_5, %c0_6] : memref<1x128xi32, #tpu.memory_space<vmem>>, vector<1x128xi32>
      %29 = vector.broadcast %28 : vector<1x128xi32> to vector<8x128xi32>
      %30 = arith.cmpi eq, %27, %29 : vector<8x128xi32>
      %31 = arith.extui %30 : vector<8x128xi1> to vector<8x128xi32>
      %32 = arith.sitofp %31 : vector<8x128xi32> to vector<8x128xf32>
      %c0_7 = arith.constant 0 : index
      %c0_8 = arith.constant 0 : index
      %33 = vector.load %arg8[%c0_7, %c0_8] : memref<8x32xf32, #tpu.memory_space<vmem>>, vector<8x32xf32>
      %cst_9 = arith.constant dense<0.000000e+00> : vector<8x32xf32>
      %34 = tpu.matmul %32, %26, %cst_9 {dimension_numbers = #tpu.dot_dimension_numbers<[1], [0], [0], [1], [0, 0, 1, 1], [], []>} : vector<8x128xf32>, vector<128x32xf32>, vector<8x32xf32> -> vector<8x32xf32>
      %35 = arith.addf %33, %34 : vector<8x32xf32>
      %c0_10 = arith.constant 0 : index
      %c0_11 = arith.constant 0 : index
      %36 = vector.load %arg8[%c0_10, %c0_11] : memref<8x32xf32, #tpu.memory_space<vmem>>, vector<8x32xf32>
      tpu.vector_store %arg8[%c0_10, %c0_11], %35 {strides = array<i32>} : memref<8x32xf32, #tpu.memory_space<vmem>>, vector<8x32xf32>,
    } else {
    }
    %c2_i32 = arith.constant 2 : i32
    %19 = arith.cmpi eq, %arg0, %c2_i32 : i32
    %20 = arith.extui %19 : i1 to i32
    %c0_i32_3 = arith.constant 0 : i32
    %21 = arith.cmpi ne, %20, %c0_i32_3 : i32
    scf.if %21 {
      %c0 = arith.constant 0 : index
      %c0_4 = arith.constant 0 : index
      %22 = vector.load %arg8[%c0, %c0_4] : memref<8x32xf32, #tpu.memory_space<vmem>>, vector<8x32xf32>
      %c0_5 = arith.constant 0 : index
      %c0_6 = arith.constant 0 : index
      %23 = vector.load %arg5[%c0_5, %c0_6] : memref<32x128xf32, #tpu.memory_space<vmem>>, vector<32x128xf32>
      %cst = arith.constant dense<0.000000e+00> : vector<8x128xf32>
      %24 = tpu.matmul %22, %23, %cst {dimension_numbers = #tpu.dot_dimension_numbers<[1], [0], [0], [1], [0, 0, 1, 1], [], []>} : vector<8x32xf32>, vector<32x128xf32>, vector<8x128xf32> -> vector<8x128xf32>
      %c0_7 = arith.constant 0 : index
      %c0_8 = arith.constant 0 : index
      %25 = vector.load %arg6[%c0_7, %c0_8] : memref<1x128xf32, #tpu.memory_space<vmem>>, vector<1x128xf32>
      %26 = vector.broadcast %25 : vector<1x128xf32> to vector<8x128xf32>
      %27 = arith.addf %24, %26 : vector<8x128xf32>
      %28 = arith.negf %27 : vector<8x128xf32>
      %29 = math.exp %28 : vector<8x128xf32>
      %cst_9 = arith.constant 1.000000e+00 : f32
      %30 = vector.broadcast %cst_9 : f32 to vector<8x128xf32>
      %31 = arith.addf %30, %29 : vector<8x128xf32>
      %32 = arith.divf %30, %31 : vector<8x128xf32>
      %c0_10 = arith.constant 0 : index
      %c0_11 = arith.constant 0 : index
      %33 = vector.load %arg7[%c0_10, %c0_11] : memref<8x128xf32, #tpu.memory_space<vmem>>, vector<8x128xf32>
      tpu.vector_store %arg7[%c0_10, %c0_11], %32 {strides = array<i32>} : memref<8x128xf32, #tpu.memory_space<vmem>>, vector<8x128xf32>,
    } else {
    }
    return
  }
  func.func @transform_0(%arg0: i32, %arg1: memref<3xi32, #tpu.memory_space<smem>>, %arg2: memref<3xi32, #tpu.memory_space<smem>>) -> (i32, i32) {
    %c0_i32 = arith.constant 0 : i32
    %c0_i32_0 = arith.constant 0 : i32
    return %c0_i32, %arg0 : i32, i32
  }
  func.func @transform_1(%arg0: i32, %arg1: memref<3xi32, #tpu.memory_space<smem>>, %arg2: memref<3xi32, #tpu.memory_space<smem>>) -> (i32, i32) {
    %c0_i32 = arith.constant 0 : i32
    %c0_i32_0 = arith.constant 0 : i32
    return %arg0, %c0_i32 : i32, i32
  }
  func.func @transform_2(%arg0: i32, %arg1: memref<3xi32, #tpu.memory_space<smem>>, %arg2: memref<3xi32, #tpu.memory_space<smem>>) -> (i32, i32) {
    %c0_i32 = arith.constant 0 : i32
    %c0_i32_0 = arith.constant 0 : i32
    %c0_i32_1 = arith.constant 0 : i32
    return %c0_i32, %c0_i32_0 : i32, i32
  }
  func.func @transform_3(%arg0: i32, %arg1: memref<3xi32, #tpu.memory_space<smem>>, %arg2: memref<3xi32, #tpu.memory_space<smem>>) -> (i32, i32) {
    %c0_i32 = arith.constant 0 : i32
    %c0_i32_0 = arith.constant 0 : i32
    %c0_i32_1 = arith.constant 0 : i32
    return %c0_i32, %c0_i32_0 : i32, i32
  }
  func.func @transform_4(%arg0: i32, %arg1: memref<3xi32, #tpu.memory_space<smem>>, %arg2: memref<3xi32, #tpu.memory_space<smem>>) -> (i32, i32) {
    %c0_i32 = arith.constant 0 : i32
    %c0_i32_0 = arith.constant 0 : i32
    %c0_i32_1 = arith.constant 0 : i32
    return %c0_i32, %c0_i32_0 : i32, i32
  }
}

</mosaic_0001>

<llo_original>
// kernel: tpu_custom_call.1
$region0: #{tpu_custom_call.1}
  #allocation0 [shape = 'u32[]', space=smem, size = 0x4, offset = 0x4, fixed_abs, tag = 'smem constant byte address 0x4 - core index']
  #allocation1 [shape = 'u32[72,128]{1,0:T(1,128)}', space=vmem, size = 0x9000, scoped, tag = 'internal scratch']
  #allocation2 [shape = 'f32[8,32]{1,0:T(8,128)}', space=vmem, size = 0x1000, scoped, tag = 'scratch operand']
  #allocation3 [shape = 's32[1]{0}', space=sflag, size = 0x4, scoped, tag = 'scoped memory for tpu_custom_call.1']
  #allocation4 [shape = 'u8[512]{0}', space=smem, size = 0x200, scoped, tag = 'prefetched SMEM operand 0']
  #allocation5 [shape = 'u8[512]{0}', space=smem, size = 0x200, scoped, tag = 'prefetched SMEM operand 1']
  %s0 = inlined_call_operand.vmem [shape: s32[3], index: 0, kind: input, shape index: {}]
  %s1 = inlined_call_operand.vmem [shape: s32[3], index: 1, kind: input, shape index: {}]
  %s2 = inlined_call_operand.vmem [shape: s32[1,300], index: 2, kind: input, shape index: {}]
  %s3 = inlined_call_operand.vmem [shape: f32[300,32], index: 3, kind: input, shape index: {}]
  %s4 = inlined_call_operand.vmem [shape: f32[32,128], index: 4, kind: input, shape index: {}]
  %s5 = inlined_call_operand.vmem [shape: f32[1,128], index: 5, kind: input, shape index: {}]
  %s6 = inlined_call_operand.hbm [shape: f32[8,128], index: 6, kind: output, shape index: {}]
  %s7 = sld [smem:[#allocation0]]
  $region65: #{tpu_custom_call.1} parent=0
    _
  %s9 = ssub.s32 1, %s7
  %s10 = scalar_select 0, %s9, %s7
  %s12 = sshll.u32 %s0, 4
  %s13 = int_to_ptr.vmem [resolvable:$true] %s12
  %15 = dma.vmem_to_smem %s13, 16, [#allocation4], [#allocation3]
  %s17 = sshll.u32 %s1, 4
  %s18 = int_to_ptr.vmem [resolvable:$true] %s17
  %20 = dma.vmem_to_smem %s18, 16, [#allocation5], [#allocation3]
  %22 = dma.done [#allocation3], 32
  %23 = sfence
  $region1: #{tpu_custom_call.1} parent=0
    #allocation6 [shape = 'u8[4096]{0}', space=vmem, size = 0x1000, scoped, tag = 'output window, operand 0, single buffered']
    #allocation7 [shape = 's32[2]{0}', space=sflag, size = 0x8, scoped, tag = 'scoped memory for tpu_custom_call.1']
    %24 = vsyncpa [#allocation7], 0
    loop: start=0, step=1, limit=5
    $region2: #{tpu_custom_call.1} parent=1 // loop_pre_header
      _
    $region3: #{tpu_custom_call.1} parent=1 // loop_header
      %s26 = sphi 0, %s30
      %p27 = scmp.ge.s32.totalorder %s26, 5
      %s36 = sphi 0, %s38
      %s39 = sphi 0, %s36
      %s40 = sphi 0, %s39
      %s56 = sphi 0, %s40
      %s62 = sphi 0, %s64
      %s65 = sphi 0, %s62
      %s66 = sphi 0, %s65
      %s82 = sphi 0, %s66
      %s86 = sphi 0, %s86
      %s88 = sphi 0, %s86
      %s89 = sphi 0, %s88
      %s103 = sphi 0, %s89
      %s107 = sphi 0, %s107
      %s109 = sphi 0, %s107
      %s110 = sphi 0, %s109
      %s124 = sphi 0, %s110
      %s128 = sphi 0, %s128
      %s130 = sphi 0, %s128
      %s131 = sphi 0, %s130
      %s145 = sphi 0, %s131
    $region4: #{tpu_custom_call.1} parent=1 // loop_header_branch
      %29 = sbr.rel (%p27) target = $region8
    $region5: #{tpu_custom_call.1} parent=1 // loop_body
      %s31 = ssub.s32 %s26, 1
      %s32 = ssub.s32 %s26, 2
      %s33 = sadd.s32 %s26, 1
      %s34 = ssub.s32 %s26, %s33
      %p35 = scmp.eq.s32.totalorder %s34, 0
      %s37 = sadd.s32 %s36, 1
      %s38 = scalar_select %p35, %s36, %s37
      %p41 = pneg %p35
      %p42 = scmp.eq.s32.totalorder %s26, 2
      %p43 = por %p41, %p42
      %p44 = scmp.ne.s32.totalorder %s36, %s39
      %p45 = scmp.eq.s32.totalorder %s26, 0
      %p46 = por %p44, %p45
      %p47 = scmp.ne.s32.totalorder %s36, %s39
      %p48 = scmp.eq.s32.totalorder %s31, 2
      %p49 = por %p47, %p48
      %p50 = scmp.ne.s32.totalorder %s39, %s40
      %p51 = scmp.eq.s32.totalorder %s31, 0
      %p52 = por %p50, %p51
      %p53 = scmp.ne.s32.totalorder %s39, %s40
      %p54 = scmp.eq.s32.totalorder %s32, 2
      %p55 = por %p53, %p54
      %p57 = scmp.ne.s32.totalorder %s40, %s56
      %p58 = scmp.eq.s32.totalorder %s32, 0
      %p59 = por %p57, %p58
      %s60 = ssub.s32 %s26, %s33
      %p61 = scmp.eq.s32.totalorder %s60, 0
      %s63 = sadd.s32 %s62, 1
      %s64 = scalar_select %p61, %s62, %s63
      %p67 = pneg %p61
      %p68 = scmp.eq.s32.totalorder %s26, 2
      %p69 = por %p67, %p68
      %p70 = scmp.ne.s32.totalorder %s62, %s65
      %p71 = scmp.eq.s32.totalorder %s26, 0
      %p72 = por %p70, %p71
      %p73 = scmp.ne.s32.totalorder %s62, %s65
      %p74 = scmp.eq.s32.totalorder %s31, 2
      %p75 = por %p73, %p74
      %p76 = scmp.ne.s32.totalorder %s65, %s66
      %p77 = scmp.eq.s32.totalorder %s31, 0
      %p78 = por %p76, %p77
      %p79 = scmp.ne.s32.totalorder %s65, %s66
      %p80 = scmp.eq.s32.totalorder %s32, 2
      %p81 = por %p79, %p80
      %p83 = scmp.ne.s32.totalorder %s66, %s82
      %p84 = scmp.eq.s32.totalorder %s32, 0
      %p85 = por %p83, %p84
      %s87 = sadd.s32 %s86, 1
      %p90 = scmp.eq.s32.totalorder %s26, 2
      %p91 = scmp.ne.s32.totalorder %s86, %s88
      %p92 = scmp.eq.s32.totalorder %s26, 0
      %p93 = por %p91, %p92
      %p94 = scmp.ne.s32.totalorder %s86, %s88
      %p95 = scmp.eq.s32.totalorder %s31, 2
      %p96 = por %p94, %p95
      %p97 = scmp.ne.s32.totalorder %s88, %s89
      %p98 = scmp.eq.s32.totalorder %s31, 0
      %p99 = por %p97, %p98
      %p100 = scmp.ne.s32.totalorder %s88, %s89
      %p101 = scmp.eq.s32.totalorder %s32, 2
      %p102 = por %p100, %p101
      %p104 = scmp.ne.s32.totalorder %s89, %s103
      %p105 = scmp.eq.s32.totalorder %s32, 0
      %p106 = por %p104, %p105
      %s108 = sadd.s32 %s107, 1
      %p111 = scmp.eq.s32.totalorder %s26, 2
      %p112 = scmp.ne.s32.totalorder %s107, %s109
      %p113 = scmp.eq.s32.totalorder %s26, 0
      %p114 = por %p112, %p113
      %p115 = scmp.ne.s32.totalorder %s107, %s109
      %p116 = scmp.eq.s32.totalorder %s31, 2
      %p117 = por %p115, %p116
      %p118 = scmp.ne.s32.totalorder %s109, %s110
      %p119 = scmp.eq.s32.totalorder %s31, 0
      %p120 = por %p118, %p119
      %p121 = scmp.ne.s32.totalorder %s109, %s110
      %p122 = scmp.eq.s32.totalorder %s32, 2
      %p123 = por %p121, %p122
      %p125 = scmp.ne.s32.totalorder %s110, %s124
      %p126 = scmp.eq.s32.totalorder %s32, 0
      %p127 = por %p125, %p126
      %s129 = sadd.s32 %s128, 1
      %p132 = scmp.eq.s32.totalorder %s26, 2
      %p133 = scmp.ne.s32.totalorder %s128, %s130
      %p134 = scmp.eq.s32.totalorder %s26, 0
      %p135 = por %p133, %p134
      %p136 = scmp.ne.s32.totalorder %s128, %s130
      %p137 = scmp.eq.s32.totalorder %s31, 2
      %p138 = por %p136, %p137
      %p139 = scmp.ne.s32.totalorder %s130, %s131
      %p140 = scmp.eq.s32.totalorder %s31, 0
      %p141 = por %p139, %p140
      %p142 = scmp.ne.s32.totalorder %s130, %s131
      %p143 = scmp.eq.s32.totalorder %s32, 2
      %p144 = por %p142, %p143
      %p146 = scmp.ne.s32.totalorder %s131, %s145
      %p147 = scmp.eq.s32.totalorder %s32, 0
      %p148 = por %p146, %p147
      %p149 = scmp.le.s32.totalorder 1, %s26
      %p150 = scmp.lt.s32.totalorder %s26, 4
      %p151 = pnand %p149, %p150
      %p152 = pneg %p151
      // Predicated region
      $region9: #{tpu_custom_call.1} parent=5 // pred_check
        _
      $region10: #{tpu_custom_call.1} parent=5 // pred_check_branch
        %154 = sbr.rel (%p151) target = $region12
      $region11: #{tpu_custom_call.1} parent=5 // pred_region
        %s155 = ssub.s32 %s26, 1
        // Predicated region
        $region13: #{tpu_custom_call.1} parent=11 // pred_check
          %p156 = pneg %p99
        $region14: #{tpu_custom_call.1} parent=11 // pred_check_branch
          %158 = sbr.rel (%p156) target = $region16
        $region15: #{tpu_custom_call.1} parent=11 // pred_region
          _
        $region16: #{tpu_custom_call.1} parent=11 // pred_fallthru
          _
        // Predicated region
        $region17: #{tpu_custom_call.1} parent=11 // pred_check
          %p159 = pneg %p120
        $region18: #{tpu_custom_call.1} parent=11 // pred_check_branch
          %161 = sbr.rel (%p159) target = $region20
        $region19: #{tpu_custom_call.1} parent=11 // pred_region
          _
        $region20: #{tpu_custom_call.1} parent=11 // pred_fallthru
          _
      $region12: #{tpu_custom_call.1} parent=5 // pred_fallthru
        _
      %p162 = scmp.lt.s32.totalorder %s26, 3
      // Predicated region
      $region21: #{tpu_custom_call.1} parent=5 // pred_check
        %p163 = pneg %p162
      $region22: #{tpu_custom_call.1} parent=5 // pred_check_branch
        %165 = sbr.rel (%p163) target = $region24
      $region23: #{tpu_custom_call.1} parent=5 // pred_region
        // Predicated region
        $region25: #{tpu_custom_call.1} parent=23 // pred_check
          %p166 = pneg %p46
        $region26: #{tpu_custom_call.1} parent=23 // pred_check_branch
          %168 = sbr.rel (%p166) target = $region28
        $region27: #{tpu_custom_call.1} parent=23 // pred_region
          %p169 = scmp.lt.s32.totalorder %s26, 2
          %s170 = scalar_select %p169, %s26, 2
          %s171 = scalar_lea.vmem %s2, %s170
        $region28: #{tpu_custom_call.1} parent=23 // pred_fallthru
          _
        // Predicated region
        $region29: #{tpu_custom_call.1} parent=23 // pred_check
          %p172 = pneg %p72
        $region30: #{tpu_custom_call.1} parent=23 // pred_check_branch
          %174 = sbr.rel (%p172) target = $region32
        $region31: #{tpu_custom_call.1} parent=23 // pred_region
          %s175 = smul.u32 16, %s26
          %s176 = ssub.s32 38, %s175
          %p177 = scmp.lt.s32.totalorder %s176, 16
          %s178 = scalar_select %p177, %s176, 16
          %s179 = smul.u32 8, %s178
          %p180 = scmp.lt.s32.totalorder %s175, 37
          %s181 = scalar_select %p180, %s175, 37
          %s182 = smul.addr %s181, 8
          %s183 = scalar_lea.vmem %s3, %s182
          %s184 = smul.u32 16, %s26
          %s185 = ssub.s32 38, %s184
          %p186 = scmp.lt.s32.totalorder %s185, 16
          %s187 = scalar_select %p186, %s185, 16
          %s188 = smul.u32 8, %s187
        $region32: #{tpu_custom_call.1} parent=23 // pred_fallthru
          _
      $region24: #{tpu_custom_call.1} parent=5 // pred_fallthru
        _
      %p189 = scmp.le.s32.totalorder 1, %s26
      %p190 = scmp.lt.s32.totalorder %s26, 4
      %p191 = pnand %p189, %p190
      %p192 = pneg %p191
      // Predicated region
      $region33: #{tpu_custom_call.1} parent=5 // pred_check
        _
      $region34: #{tpu_custom_call.1} parent=5 // pred_check_branch
        %194 = sbr.rel (%p191) target = $region36
      $region35: #{tpu_custom_call.1} parent=5 // pred_region
        %s195 = ssub.s32 %s26, 1
        %p196 = scmp.lt.s32.totalorder %s31, 2
        %s197 = scalar_select %p196, %s31, 2
        %s198 = scalar_lea.vmem %s2, %s197
        %p199 = pneg %p52
        %p200 = pneg %p49
        %s201 = smul.u32 16, %s31
        %s202 = ssub.s32 38, %s201
        %p203 = scmp.lt.s32.totalorder %s202, 16
        %s204 = scalar_select %p203, %s202, 16
        %s205 = smul.u32 8, %s204
        %p206 = scmp.lt.s32.totalorder %s201, 37
        %s207 = scalar_select %p206, %s201, 37
        %s208 = smul.addr %s207, 8
        %s209 = scalar_lea.vmem %s3, %s208
        %p210 = pneg %p78
        %p211 = pneg %p75
        %p212 = pneg %p99
        %p213 = pneg %p96
        %p214 = pneg %p120
        %p215 = pneg %p117
        %p216 = pneg %p141
        %p217 = pneg %p138
        %p218 = scmp.lt.s32.totalorder %s31, 2
        %s219 = scalar_select %p218, %s31, 2
        %s220 = scalar_lea.vmem %s2, %s219
        %s221 = smul.u32 16, %s31
        %s222 = ssub.s32 38, %s221
        %p223 = scmp.lt.s32.totalorder %s222, 16
        %s224 = scalar_select %p223, %s222, 16
        %s225 = smul.u32 8, %s224
        %p226 = scmp.lt.s32.totalorder %s221, 37
        %s227 = scalar_select %p226, %s221, 37
        %s228 = smul.addr %s227, 8
        %s229 = scalar_lea.vmem %s3, %s228
        %s230 = smul.u32 16, %s31
        %s231 = ssub.s32 38, %s230
        %p232 = scmp.lt.s32.totalorder %s231, 16
        %s233 = scalar_select %p232, %s231, 16
        %s234 = smul.u32 8, %s233
        %p235 = scmp.eq.s32.totalorder %s31, 0
        // Predicated region
        $region37: #{tpu_custom_call.1} parent=35 // pred_check
          %p236 = pneg %p235
        $region38: #{tpu_custom_call.1} parent=35 // pred_check_branch
          %238 = sbr.rel (%p236) target = $region40
        $region39: #{tpu_custom_call.1} parent=35 // pred_region
          %vm239 = vcmask 261120
          %240 = vst.msk [vmem:[#allocation2] sm:$0xff] %vm239, 0.0
        $region40: #{tpu_custom_call.1} parent=35 // pred_fallthru
          _
        %s241 = sld [smem:[#allocation4 + %s31]]
        %s242 = sld [smem:[#allocation5 + %s31]]
        %v243 = vlaneseq
        %v244 = vshrl.u32 %v243, 7
        %v245 = vadd.s32 %v244, 8
        %v246 = vadd.s32 %v244, 16
        %v247 = vadd.s32 %v244, 24
        %v248 = vadd.s32 %v244, 32
        %v249 = vadd.s32 %v244, 40
        %v250 = vadd.s32 %v244, 48
        %v251 = vadd.s32 %v244, 56
        %v252 = vadd.s32 %v244, 64
        %v253 = vadd.s32 %v244, 72
        %v254 = vadd.s32 %v244, 80
        %v255 = vadd.s32 %v244, 88
        %v256 = vadd.s32 %v244, 96
        %v257 = vadd.s32 %v244, 104
        %v258 = vadd.s32 %v244, 112
        %v259 = vadd.s32 %v244, 120
        %s260 = smul.u32 %s31, 128
        %v261 = vstv %s260
        %v262 = vadd.s32 %v261, %v244
        %v263 = vadd.s32 %v261, %v245
        %v264 = vadd.s32 %v261, %v246
        %v265 = vadd.s32 %v261, %v247
        %v266 = vadd.s32 %v261, %v248
        %v267 = vadd.s32 %v261, %v249
        %v268 = vadd.s32 %v261, %v250
        %v269 = vadd.s32 %v261, %v251
        %v270 = vadd.s32 %v261, %v252
        %v271 = vadd.s32 %v261, %v253
        %v272 = vadd.s32 %v261, %v254
        %v273 = vadd.s32 %v261, %v255
        %v274 = vadd.s32 %v261, %v256
        %v275 = vadd.s32 %v261, %v257
        %v276 = vadd.s32 %v261, %v258
        %v277 = vadd.s32 %v261, %v259
        %vm278 = vcmp.lt.s32.totalorder %v262, 300
        %vm279 = vcmp.lt.s32.totalorder %v263, 300
        %vm280 = vcmp.lt.s32.totalorder %v264, 300
        %vm281 = vcmp.lt.s32.totalorder %v265, 300
        %vm282 = vcmp.lt.s32.totalorder %v266, 300
        %vm283 = vcmp.lt.s32.totalorder %v267, 300
        %vm284 = vcmp.lt.s32.totalorder %v268, 300
        %vm285 = vcmp.lt.s32.totalorder %v269, 300
        %vm286 = vcmp.lt.s32.totalorder %v270, 300
        %vm287 = vcmp.lt.s32.totalorder %v271, 300
        %vm288 = vcmp.lt.s32.totalorder %v272, 300
        %vm289 = vcmp.lt.s32.totalorder %v273, 300
        %vm290 = vcmp.lt.s32.totalorder %v274, 300
        %vm291 = vcmp.lt.s32.totalorder %v275, 300
        %vm292 = vcmp.lt.s32.totalorder %v276, 300
        %vm293 = vcmp.lt.s32.totalorder %v277, 300
        %p294 = scmp.eq.s32.totalorder %s241, %s242
        // Predicated region
        $region41: #{tpu_custom_call.1} parent=35 // pred_check
          %p295 = pneg %p294
        $region42: #{tpu_custom_call.1} parent=35 // pred_check_branch
          %297 = sbr.rel (%p295) target = $region44
        $region43: #{tpu_custom_call.1} parent=35 // pred_region
          %v298 = vld [vmem:[%s229] sm:$0xff]
          %v299 = vld [vmem:[%s229 + $0x8] sm:$0xff]
          %v300 = vld [vmem:[%s229 + $0x10] sm:$0xff]
          %v301 = vld [vmem:[%s229 + $0x18] sm:$0xff]
          %v302 = vld [vmem:[%s229 + $0x20] sm:$0xff]
          %v303 = vld [vmem:[%s229 + $0x28] sm:$0xff]
          %v304 = vld [vmem:[%s229 + $0x30] sm:$0xff]
          %v305 = vld [vmem:[%s229 + $0x38] sm:$0xff]
          %v306 = vld [vmem:[%s229 + $0x40] sm:$0xff]
          %v307 = vld [vmem:[%s229 + $0x48] sm:$0xff]
          %v308 = vld [vmem:[%s229 + $0x50] sm:$0xff]
          %v309 = vld [vmem:[%s229 + $0x58] sm:$0xff]
          %v310 = vld [vmem:[%s229 + $0x60] sm:$0xff]
          %v311 = vld [vmem:[%s229 + $0x68] sm:$0xff]
          %v312 = vld [vmem:[%s229 + $0x70] sm:$0xff]
          %v313 = vld [vmem:[%s229 + $0x78] sm:$0xff]
          %v314 = vsel %vm278, 1, 0
          %v315 = vsel %vm279, 1, 0
          %v316 = vsel %vm280, 1, 0
          %v317 = vsel %vm281, 1, 0
          %v318 = vsel %vm282, 1, 0
          %v319 = vsel %vm283, 1, 0
          %v320 = vsel %vm284, 1, 0
          %v321 = vsel %vm285, 1, 0
          %v322 = vsel %vm286, 1, 0
          %v323 = vsel %vm287, 1, 0
          %v324 = vsel %vm288, 1, 0
          %v325 = vsel %vm289, 1, 0
          %v326 = vsel %vm290, 1, 0
          %v327 = vsel %vm291, 1, 0
          %v328 = vsel %vm292, 1, 0
          %v329 = vsel %vm293, 1, 0
          %vm330 = vcmp.eq.s32.totalorder %v314, 1
          %vm331 = vcmp.eq.s32.totalorder %v315, 1
          %vm332 = vcmp.eq.s32.totalorder %v316, 1
          %vm333 = vcmp.eq.s32.totalorder %v317, 1
          %vm334 = vcmp.eq.s32.totalorder %v318, 1
          %vm335 = vcmp.eq.s32.totalorder %v319, 1
          %vm336 = vcmp.eq.s32.totalorder %v320, 1
          %vm337 = vcmp.eq.s32.totalorder %v321, 1
          %vm338 = vcmp.eq.s32.totalorder %v322, 1
          %vm339 = vcmp.eq.s32.totalorder %v323, 1
          %vm340 = vcmp.eq.s32.totalorder %v324, 1
          %vm341 = vcmp.eq.s32.totalorder %v325, 1
          %vm342 = vcmp.eq.s32.totalorder %v326, 1
          %vm343 = vcmp.eq.s32.totalorder %v327, 1
          %vm344 = vcmp.eq.s32.totalorder %v328, 1
          %vm345 = vcmp.eq.s32.totalorder %v329, 1
          %v346 = vsel %vm330, %v298, 0.0
          %v347 = vsel %vm331, %v299, 0.0
          %v348 = vsel %vm332, %v300, 0.0
          %v349 = vsel %vm333, %v301, 0.0
          %v350 = vsel %vm334, %v302, 0.0
          %v351 = vsel %vm335, %v303, 0.0
          %v352 = vsel %vm336, %v304, 0.0
          %v353 = vsel %vm337, %v305, 0.0
          %v354 = vsel %vm338, %v306, 0.0
          %v355 = vsel %vm339, %v307, 0.0
          %v356 = vsel %vm340, %v308, 0.0
          %v357 = vsel %vm341, %v309, 0.0
          %v358 = vsel %vm342, %v310, 0.0
          %v359 = vsel %vm343, %v311, 0.0
          %v360 = vsel %vm344, %v312, 0.0
          %v361 = vsel %vm345, %v313, 0.0
          %vm362 = vcmask 261120
          %v363 = vsel %vm362, %v346, 0.0
          %v364 = vsel %vm362, %v347, 0.0
          %v365 = vadd.f32 %v363, %v364
          %v366 = vsel %vm362, %v348, 0.0
          %v367 = vadd.f32 %v365, %v366
          %v368 = vsel %vm362, %v349, 0.0
          %v369 = vadd.f32 %v367, %v368
          %v370 = vsel %vm362, %v350, 0.0
          %v371 = vadd.f32 %v369, %v370
          %v372 = vsel %vm362, %v351, 0.0
          %v373 = vadd.f32 %v371, %v372
          %v374 = vsel %vm362, %v352, 0.0
          %v375 = vadd.f32 %v373, %v374
          %v376 = vsel %vm362, %v353, 0.0
          %v377 = vadd.f32 %v375, %v376
          %v378 = vsel %vm362, %v354, 0.0
          %v379 = vadd.f32 %v377, %v378
          %v380 = vsel %vm362, %v355, 0.0
          %v381 = vadd.f32 %v379, %v380
          %v382 = vsel %vm362, %v356, 0.0
          %v383 = vadd.f32 %v381, %v382
          %v384 = vsel %vm362, %v357, 0.0
          %v385 = vadd.f32 %v383, %v384
          %v386 = vsel %vm362, %v358, 0.0
          %v387 = vadd.f32 %v385, %v386
          %v388 = vsel %vm362, %v359, 0.0
          %v389 = vadd.f32 %v387, %v388
          %v390 = vsel %vm362, %v360, 0.0
          %v391 = vadd.f32 %v389, %v390
          %v392 = vsel %vm362, %v361, 0.0
          %v393 = vadd.f32 %v391, %v392
          %v394 = vrot.slane %v393, 4
          %v395 = vadd.f32 %v393, %v394
          %v396 = vrot.slane %v395, 2
          %v397 = vadd.f32 %v395, %v396
          %v398 = vrot.slane %v397, 1
          %v399 = vadd.f32 %v397, %v398
          %v400 = vstv %s241
          %vm401 = vcmp.eq.s32.totalorder %v244, %v400
          %v402 = vld [vmem:[#allocation2] sm:$0xff]
          %v403 = vsel %vm401, 1, 0
          %vm404 = vcmp.eq.s32.totalorder %v403, 1
          %v405 = vsel %vm404, %v399, 0.0
          %v406 = vadd.f32 %v402, %v405
          %407 = vst.msk [vmem:[#allocation2] sm:$0xff] %vm362, %v406
        $region44: #{tpu_custom_call.1} parent=35 // pred_fallthru
          _
        %p408 = scmp.ne.s32.totalorder %s241, %s242
        // Predicated region
        $region45: #{tpu_custom_call.1} parent=35 // pred_check
          %p409 = pneg %p408
        $region46: #{tpu_custom_call.1} parent=35 // pred_check_branch
          %411 = sbr.rel (%p409) target = $region48
        $region47: #{tpu_custom_call.1} parent=35 // pred_region
          %v412 = vld [vmem:[%s229] sm:$0xff]
          %v413 = vld [vmem:[%s229 + $0x8] sm:$0xff]
          %v414 = vld [vmem:[%s229 + $0x10] sm:$0xff]
          %v415 = vld [vmem:[%s229 + $0x18] sm:$0xff]
          %v416 = vld [vmem:[%s229 + $0x20] sm:$0xff]
          %v417 = vld [vmem:[%s229 + $0x28] sm:$0xff]
          %v418 = vld [vmem:[%s229 + $0x30] sm:$0xff]
          %v419 = vld [vmem:[%s229 + $0x38] sm:$0xff]
          %v420 = vld [vmem:[%s229 + $0x40] sm:$0xff]
          %v421 = vld [vmem:[%s229 + $0x48] sm:$0xff]
          %v422 = vld [vmem:[%s229 + $0x50] sm:$0xff]
          %v423 = vld [vmem:[%s229 + $0x58] sm:$0xff]
          %v424 = vld [vmem:[%s229 + $0x60] sm:$0xff]
          %v425 = vld [vmem:[%s229 + $0x68] sm:$0xff]
          %v426 = vld [vmem:[%s229 + $0x70] sm:$0xff]
          %v427 = vld [vmem:[%s229 + $0x78] sm:$0xff]
          %v428 = vsel %vm278, 1, 0
          %v429 = vsel %vm279, 1, 0
          %v430 = vsel %vm280, 1, 0
          %v431 = vsel %vm281, 1, 0
          %v432 = vsel %vm282, 1, 0
          %v433 = vsel %vm283, 1, 0
          %v434 = vsel %vm284, 1, 0
          %v435 = vsel %vm285, 1, 0
          %v436 = vsel %vm286, 1, 0
          %v437 = vsel %vm287, 1, 0
          %v438 = vsel %vm288, 1, 0
          %v439 = vsel %vm289, 1, 0
          %v440 = vsel %vm290, 1, 0
          %v441 = vsel %vm291, 1, 0
          %v442 = vsel %vm292, 1, 0
          %v443 = vsel %vm293, 1, 0
          %vm444 = vcmp.eq.s32.totalorder %v428, 1
          %vm445 = vcmp.eq.s32.totalorder %v429, 1
          %vm446 = vcmp.eq.s32.totalorder %v430, 1
          %vm447 = vcmp.eq.s32.totalorder %v431, 1
          %vm448 = vcmp.eq.s32.totalorder %v432, 1
          %vm449 = vcmp.eq.s32.totalorder %v433, 1
          %vm450 = vcmp.eq.s32.totalorder %v434, 1
          %vm451 = vcmp.eq.s32.totalorder %v435, 1
          %vm452 = vcmp.eq.s32.totalorder %v436, 1
          %vm453 = vcmp.eq.s32.totalorder %v437, 1
          %vm454 = vcmp.eq.s32.totalorder %v438, 1
          %vm455 = vcmp.eq.s32.totalorder %v439, 1
          %vm456 = vcmp.eq.s32.totalorder %v440, 1
          %vm457 = vcmp.eq.s32.totalorder %v441, 1
          %vm458 = vcmp.eq.s32.totalorder %v442, 1
          %vm459 = vcmp.eq.s32.totalorder %v443, 1
          %v460 = vsel %vm444, %v412, 0.0
          %v461 = vsel %vm445, %v413, 0.0
          %v462 = vsel %vm446, %v414, 0.0
          %v463 = vsel %vm447, %v415, 0.0
          %v464 = vsel %vm448, %v416, 0.0
          %v465 = vsel %vm449, %v417, 0.0
          %v466 = vsel %vm450, %v418, 0.0
          %v467 = vsel %vm451, %v419, 0.0
          %v468 = vsel %vm452, %v420, 0.0
          %v469 = vsel %vm453, %v421, 0.0
          %v470 = vsel %vm454, %v422, 0.0
          %v471 = vsel %vm455, %v423, 0.0
          %v472 = vsel %vm456, %v424, 0.0
          %v473 = vsel %vm457, %v425, 0.0
          %v474 = vsel %vm458, %v426, 0.0
          %v475 = vsel %vm459, %v427, 0.0
          %v476 = vld [vmem:[%s220] sm:$0x1]
          %v477 = vperm.slane %v476, 0
          %vm478 = vcmp.eq.s32.totalorder %v244, %v477
          %v479 = vsel %vm478, 1, 0
          %v480 = vcvt.s32.f32 %v479
          %v481 = vld [vmem:[#allocation2] sm:$0xff]
          %482 = vmatpush.msra.mxu0 %v475
          %483 = vmatpush.msra.mxu0 %v474
          %484 = vmatpush.msra.mxu0 %v473
          %485 = vmatpush.msra.mxu0 %v472
          %486 = vmatpush.msra.mxu0 %v471
          %487 = vmatpush.msra.mxu0 %v470
          %488 = vmatpush.msra.mxu0 %v469
          %489 = vmatpush.msra.mxu0 %v468
          %490 = vmatpush.msra.mxu0 %v467
          %491 = vmatpush.msra.mxu0 %v466
          %492 = vmatpush.msra.mxu0 %v465
          %493 = vmatpush.msra.mxu0 %v464
          %494 = vmatpush.msra.mxu0 %v463
          %495 = vmatpush.msra.mxu0 %v462
          %496 = vmatpush.msra.mxu0 %v461
          %497 = vmatpush.msra.mxu0 %v460
          %498 = vmatmul.f32.gmra.mxu0 %v480
          %v499 = vpop.f32.mrf.mxu0
          %v500 = vadd.f32 0.0, %v499
          %501 = vdwg.mxu0
          %v502 = vadd.f32 %v481, %v500
          %vm503 = vcmask 261120
          %504 = vst.msk [vmem:[#allocation2] sm:$0xff] %vm503, %v502
        $region48: #{tpu_custom_call.1} parent=35 // pred_fallthru
          _
        %p505 = scmp.eq.s32.totalorder %s31, 2
        // Predicated region
        $region49: #{tpu_custom_call.1} parent=35 // pred_check
          %p506 = pneg %p505
        $region50: #{tpu_custom_call.1} parent=35 // pred_check_branch
          %508 = sbr.rel (%p506) target = $region52
        $region51: #{tpu_custom_call.1} parent=35 // pred_region
          %v509 = vld [vmem:[#allocation2] sm:$0xff]
          %v510 = vld [vmem:[%s4] sm:$0xff]
          %v511 = vld [vmem:[%s4 + $0x8] sm:$0xff]
          %v512 = vld [vmem:[%s4 + $0x10] sm:$0xff]
          %v513 = vld [vmem:[%s4 + $0x18] sm:$0xff]
          %v514 = vld [vmem:[%s5] sm:$0x1]
          %v516 = vperm.slane %v514, 0
          %vm518 = vcmask 261120
          %v520 = vsel %vm518, %v509, 0
          %522 = vmatpush.msra.mxu0 0.0
          %523 = vmatpush.msra.mxu0 0.0
          %524 = vmatpush.msra.mxu0 0.0
          %525 = vmatpush.msra.mxu0 0.0
          %526 = vmatpush.msra.mxu0 0.0
          %527 = vmatpush.msra.mxu0 0.0
          %528 = vmatpush.msra.mxu0 0.0
          %529 = vmatpush.msra.mxu0 0.0
          %530 = vmatpush.msra.mxu0 0.0
          %531 = vmatpush.msra.mxu0 0.0
          %532 = vmatpush.msra.mxu0 0.0
          %533 = vmatpush.msra.mxu0 0.0
          %534 = vmatpush.msra.mxu0 %v513
          %535 = vmatpush.msra.mxu0 %v512
          %536 = vmatpush.msra.mxu0 %v511
          %537 = vmatpush.msra.mxu0 %v510
          %538 = vmatmul.f32.gmra.mxu0 %v520
          %v539 = vpop.f32.mrf.mxu0
          %v540 = vadd.f32 %v516, %v539
          %541 = vdwg.mxu0
          %v542 = vxor.u32 %v540, 2147483648
          %v543 = vmul.f32 %v542, 1.442695
          %v544 = vpow.pop %v543
          %v545 = vadd.f32 %v544, 1.0
          %v546 = vrcp.pop %v545
          %v547 = vmul.f32 %v545, %v546
          %v548 = vsub.f32 1.0, %v547
          %v549 = vmul.f32 %v546, %v548
          %v550 = vadd.f32 %v546, %v549
          %vm551 = vweird.f32 %v545
          %vm552 = vweird.f32 %v546
          %vm553 = vmor %vm551, %vm552
          %v554 = vsel %vm553, %v546, %v550
          %v555 = vand.u32 2147483647, %v545
          %vm556 = vcmp.eq.f32.partialorder %v555, 8.507059e+37
          %v557 = vand.u32 %v545, 2147483648
          %v558 = vor.u32 1.1754944e-38, %v557
          %v559 = vsel %vm556, %v558, %v554
          %v560 = vmul.f32 1.0, %v559
          %561 = vst [vmem:[#allocation6] sm:$0xff] %v560
        $region52: #{tpu_custom_call.1} parent=35 // pred_fallthru
          _
        // Predicated region
        $region53: #{tpu_custom_call.1} parent=35 // pred_check
          %p562 = pneg %p138
        $region54: #{tpu_custom_call.1} parent=35 // pred_check_branch
          %564 = sbr.rel (%p562) target = $region56
        $region55: #{tpu_custom_call.1} parent=35 // pred_region
          %566 = vsyncadd [#allocation7], 0
          %s568 = sshll.u32 [#allocation6], 4
          %s569 = int_to_ptr.vmem [resolvable:$true] %s568
          %s570 = sshll.u32 %s6, 4
          %s571 = int_to_ptr.hbm [resolvable:$true] %s570
          %573 = dma.vmem_to_hbm [thread:$0]  %s569, 128, %s571, [#allocation7]
        $region56: #{tpu_custom_call.1} parent=35 // pred_fallthru
          _
        // Predicated region
        $region57: #{tpu_custom_call.1} parent=35 // pred_check
          %p574 = pneg %p138
        $region58: #{tpu_custom_call.1} parent=35 // pred_check_branch
          %576 = sbr.rel (%p574) target = $region60
        $region59: #{tpu_custom_call.1} parent=35 // pred_region
          %578 = dma.done [#allocation7], 128
        $region60: #{tpu_custom_call.1} parent=35 // pred_fallthru
          _
      $region36: #{tpu_custom_call.1} parent=5 // pred_fallthru
        _
      %p579 = scmp.le.s32.totalorder 2, %s26
      // Predicated region
      $region61: #{tpu_custom_call.1} parent=5 // pred_check
        %p580 = pneg %p579
      $region62: #{tpu_custom_call.1} parent=5 // pred_check_branch
        %582 = sbr.rel (%p580) target = $region64
      $region63: #{tpu_custom_call.1} parent=5 // pred_region
        %s583 = ssub.s32 %s26, 2
      $region64: #{tpu_custom_call.1} parent=5 // pred_fallthru
        _
    $region6: #{tpu_custom_call.1} parent=1 // loop_footer
      %s30 = sadd.s32 1, %s26
    $region7: #{tpu_custom_call.1} parent=1 // loop_footer_branch
      %25 = sbr.rel target = $region3
    $region8: #{tpu_custom_call.1} parent=1 // loop_exit
      _
    %584 = vsyncpa [#allocation7], 1
    %s585 = scalar_lea.sflag [#allocation7], 1
    %586 = vsyncpa %s585, 1

</llo_original>
